<compile_context>
chip_gen: v7x
topology: tpu7x:2x2x1
jax: 0.10.0
libtpu: 0.0.40
codegen_flags: <defaults>
</compile_context>

<pallas_src>
import functools

import jax
import jax.numpy as jnp
from jax.experimental import pallas as pl
from jax.experimental.pallas import tpu as pltpu

_LANES = 128
_SUBLANES = 8
_ROW_ALIGN = 16     # bf16 targets pack 16 rows per sublane tile -> block rows % 16 == 0
_NUM_CORES = 2      # leading "parallel" grid axis; no-op on 1-TC generations


def _cdiv(a, b):
    return -(-a // b)


def _round_up(a, b):
    return _cdiv(a, b) * b


def _make_kernel(n_valid: int, br: int, bpc: int):
    """Kernel with N / block geometry baked in as compile-time constants."""
    blk_elems = br * _LANES

    def kernel(d_ref, t_ref, ce_out, t_out):
        c = pl.program_id(0)      # core slice (parallel axis)
        i = pl.program_id(1)      # row-block within the core slice (arbitrary axis)

        @pl.when(i == 0)
        def _init():
            ce_out[...] = jnp.zeros_like(ce_out)
            t_out[...] = jnp.zeros_like(t_out)

        d = d_ref[...]                          # (br, 128) f32, x1 - x0
        t = t_ref[...].astype(jnp.float32)      # (br, 128), targets in {0, 1}

        # Binary cross entropy via numerically stable softplus:
        #   CE_i = logsumexp(x_i) - x_i[t_i] = softplus((1 - 2 t_i) * (x1_i - x0_i))
        z = (1.0 - 2.0 * t) * d
        ce = jnp.maximum(z, 0.0) + jnp.log(1.0 + jnp.exp(-jnp.abs(z)))

        start = (c * bpc + i) * blk_elems       # flat element offset of this tile

        # Full tiles: unmasked slab accumulation (pure VPU, no XLU, no per-step store).
        @pl.when(start + blk_elems <= n_valid)
        def _full_tile():
            ce_out[...] += ce.reshape(-1, _SUBLANES, _LANES).sum(axis=0)
            t_out[...] += t.reshape(-1, _SUBLANES, _LANES).sum(axis=0)

        # Tiles crossing (or past) N: mask from an in-kernel iota, no HBM mask stream.
        @pl.when(start + blk_elems > n_valid)
        def _tail_tile():
            row = jax.lax.broadcasted_iota(jnp.int32, (br, _LANES), 0)
            lane = jax.lax.broadcasted_iota(jnp.int32, (br, _LANES), 1)
            m = ((start + row * _LANES + lane) < n_valid).astype(jnp.float32)
            ce_out[...] += (ce * m).reshape(-1, _SUBLANES, _LANES).sum(axis=0)
            t_out[...] += (t * m).reshape(-1, _SUBLANES, _LANES).sum(axis=0)

    return kernel


@functools.partial(jax.jit, static_argnames=("alpha", "gamma", "block_rows"))
def focal_loss(inputs, targets, alpha=0.25, gamma=2.0, block_rows=2048):
    """inputs: (N, 2) float32 logits; targets: (N,) int in {0, 1}. Returns scalar."""
    N, C = inputs.shape
    assert C == 2, "FocalLoss kernel is specialized for binary (2-class) logits"

    a0 = float(alpha)
    a1 = 1.0 - float(alpha)

    # Minimal staging pass: one f32 stream (d = x1 - x0) + one bf16 stream (t).
    x = inputs.astype(jnp.float32)
    d = x[:, 1] - x[:, 0]
    t = targets.astype(jnp.bfloat16)            # 0/1 exact in bf16

    # Lane-dense layout: batch on the 128-lane axis, rows tiled over the grid.
    rows = _cdiv(N, _LANES)
    br = min(_round_up(int(block_rows), _ROW_ALIGN), _round_up(rows, _ROW_ALIGN))
    nb = _cdiv(rows, br)                        # data blocks needed
    bpc = _cdiv(nb, _NUM_CORES)                 # blocks per core slice
    total_rows = _NUM_CORES * bpc * br
    pad = total_rows * _LANES - N

    d_p = jnp.pad(d, (0, pad)).reshape(total_rows, _LANES)
    t_p = jnp.pad(t, (0, pad)).reshape(total_rows, _LANES)

    kernel = _make_kernel(N, br, bpc)

    in_map = lambda c, i: (c * bpc + i, 0)
    part_spec = pl.BlockSpec((None, _SUBLANES, _LANES), lambda c, i: (c, 0, 0))

    ce_part, t_part = pl.pallas_call(
        kernel,
        out_shape=(
            jax.ShapeDtypeStruct((_NUM_CORES, _SUBLANES, _LANES), jnp.float32),
            jax.ShapeDtypeStruct((_NUM_CORES, _SUBLANES, _LANES), jnp.float32),
        ),
        grid_spec=pltpu.PrefetchScalarGridSpec(
            num_scalar_prefetch=0,
            grid=(_NUM_CORES, bpc),
            in_specs=[
                pl.BlockSpec((br, _LANES), in_map),   # d  (f32)
                pl.BlockSpec((br, _LANES), in_map),   # t  (bf16)
            ],
            out_specs=[part_spec, part_spec],
        ),
        compiler_params=pltpu.CompilerParams(
            dimension_semantics=("parallel", "arbitrary"),
            vmem_limit_bytes=32 * 1024 * 1024,
        ),
        cost_estimate=pl.CostEstimate(
            flops=8 * total_rows * _LANES,
            transcendentals=2 * total_rows * _LANES,
            bytes_accessed=6 * total_rows * _LANES
            + 2 * _NUM_CORES * _SUBLANES * _LANES * 4,
        ),
    )(d_p, t_p)

    # Tiny scalar XLA epilogue: combine per-core partials and apply focal formula.
    inv_n = 1.0 / float(N)
    loss = jnp.sum(ce_part) * inv_n             # mean cross entropy (scalar)
    at_mean = a0 + (a1 - a0) * (jnp.sum(t_part) * inv_n)
    pt = jnp.exp(-loss)
    return at_mean * (1.0 - pt) ** float(gamma) * loss


def _reference(inputs, targets, alpha=0.25, gamma=2.0):
    # Pure-JAX reference mirroring the PyTorch module.
    logp = jax.nn.log_softmax(inputs.astype(jnp.float32), axis=-1)
    ce = -jnp.take_along_axis(logp, targets.reshape(-1, 1), axis=-1).squeeze(-1)
    loss = jnp.mean(ce)
    alpha_vec = jnp.array([alpha, 1.0 - alpha], dtype=jnp.float32)
    at = alpha_vec[targets]
    pt = jnp.exp(-loss)
    return jnp.mean(at * (1.0 - pt) ** gamma * loss)


if __name__ == "__main__":
    key = jax.random.PRNGKey(0)
    k1, k2, k3, k4 = jax.random.split(key, 4)

    # Small case (single grid step per core slice, fully masked tail path).
    N, C = 8, 2
    inputs = jax.random.normal(k1, (N, C), dtype=jnp.float32)
    targets = jax.random.randint(k2, (N,), 0, 2, dtype=jnp.int32)
    out = focal_loss(inputs, targets)
    jax.block_until_ready(out)
    ref = _reference(inputs, targets)
    assert jnp.allclose(out, ref, rtol=1e-5, atol=1e-6), (out, ref)

    # Larger case: default blocks (one big block per core) and tiny blocks to
    # exercise multi-tile accumulation, both full-tile and masked-tail branches.
    N2 = 5000
    inputs2 = jax.random.normal(k3, (N2, C), dtype=jnp.float32)
    targets2 = jax.random.randint(k4, (N2,), 0, 2, dtype=jnp.int32)
    out2 = focal_loss(inputs2, targets2)
    out3 = focal_loss(inputs2, targets2, block_rows=16)
    jax.block_until_ready(out2)
    jax.block_until_ready(out3)
    ref2 = _reference(inputs2, targets2)
    assert jnp.allclose(out2, ref2, rtol=1e-5, atol=1e-6), (out2, ref2)
    assert jnp.allclose(out3, ref2, rtol=1e-5, atol=1e-6), (out3, ref2)

    print("KERNEL_OK")
</pallas_src>

<mosaic_0001>
module attributes {stable_mosaic.version = 11 : i64} {
  func.func @kernel(%arg0: i32, %arg1: i32, %arg2: memref<16x128xf32, #tpu.memory_space<vmem>>, %arg3: memref<16x128xbf16, #tpu.memory_space<vmem>>, %arg4: memref<1x8x128xf32, #tpu.memory_space<vmem>>, %arg5: memref<1x8x128xf32, #tpu.memory_space<vmem>>) attributes {dimension_semantics = [#tpu.dimension_semantics<parallel>, #tpu.dimension_semantics<arbitrary>], iteration_bounds = array<i64: 2, 1>, scalar_prefetch = 0 : i64, scratch_operands = 0 : i64, tpu.core_type = #tpu.core_type<tc>, window_params = [{transform_indices = @transform_0, window_bounds = array<i64: 16, 128>}, {transform_indices = @transform_1, window_bounds = array<i64: 16, 128>}, {transform_indices = @transform_2, window_bounds = array<i64: 1, 8, 128>}, {transform_indices = @transform_3, window_bounds = array<i64: 1, 8, 128>}]} {
    %c0_i32 = arith.constant 0 : i32
    %0 = arith.cmpi eq, %arg1, %c0_i32 : i32
    %1 = arith.extui %0 : i1 to i32
    %c0_i32_0 = arith.constant 0 : i32
    %2 = arith.cmpi ne, %1, %c0_i32_0 : i32
    scf.if %2 {
      %cst_13 = arith.constant 0.000000e+00 : f32
      %32 = vector.broadcast %cst_13 : f32 to vector<8x128xf32>
      %c0_14 = arith.constant 0 : index
      %c0_15 = arith.constant 0 : index
      %c0_16 = arith.constant 0 : index
      %33 = vector.load %arg4[%c0_14, %c0_15, %c0_16] : memref<1x8x128xf32, #tpu.memory_space<vmem>>, vector<1x8x128xf32>
      %34 = vector.shape_cast %33 : vector<1x8x128xf32> to vector<8x128xf32>
      %35 = vector.shape_cast %32 : vector<8x128xf32> to vector<1x8x128xf32>
      tpu.vector_store %arg4[%c0_14, %c0_15, %c0_16], %35 {strides = array<i32>} : memref<1x8x128xf32, #tpu.memory_space<vmem>>, vector<1x8x128xf32>,
      %cst_17 = arith.constant 0.000000e+00 : f32
      %36 = vector.broadcast %cst_17 : f32 to vector<8x128xf32>
      %c0_18 = arith.constant 0 : index
      %c0_19 = arith.constant 0 : index
      %c0_20 = arith.constant 0 : index
      %37 = vector.load %arg5[%c0_18, %c0_19, %c0_20] : memref<1x8x128xf32, #tpu.memory_space<vmem>>, vector<1x8x128xf32>
      %38 = vector.shape_cast %37 : vector<1x8x128xf32> to vector<8x128xf32>
      %39 = vector.shape_cast %36 : vector<8x128xf32> to vector<1x8x128xf32>
      tpu.vector_store %arg5[%c0_18, %c0_19, %c0_20], %39 {strides = array<i32>} : memref<1x8x128xf32, #tpu.memory_space<vmem>>, vector<1x8x128xf32>,
    } else {
    }
    %c0 = arith.constant 0 : index
    %c0_1 = arith.constant 0 : index
    %3 = vector.load %arg2[%c0, %c0_1] : memref<16x128xf32, #tpu.memory_space<vmem>>, vector<16x128xf32>
    %c0_2 = arith.constant 0 : index
    %c0_3 = arith.constant 0 : index
    %4 = vector.load %arg3[%c0_2, %c0_3] : memref<16x128xbf16, #tpu.memory_space<vmem>>, vector<16x128xbf16>
    %5 = arith.extf %4 : vector<16x128xbf16> to vector<16x128xf32>
    %cst = arith.constant 2.000000e+00 : f32
    %6 = vector.broadcast %cst : f32 to vector<16x128xf32>
    %7 = arith.mulf %6, %5 : vector<16x128xf32>
    %cst_4 = arith.constant 1.000000e+00 : f32
    %8 = vector.broadcast %cst_4 : f32 to vector<16x128xf32>
    %9 = arith.subf %8, %7 : vector<16x128xf32>
    %10 = arith.mulf %9, %3 : vector<16x128xf32>
    %cst_5 = arith.constant 0.000000e+00 : f32
    %11 = vector.broadcast %cst_5 : f32 to vector<16x128xf32>
    %12 = arith.maximumf %10, %11 : vector<16x128xf32>
    %13 = math.absf %10 : vector<16x128xf32>
    %cst_6 = arith.constant 0.000000e+00 : f32
    %14 = vector.broadcast %cst_6 : f32 to vector<16x128xf32>
    %15 = arith.subf %14, %13 : vector<16x128xf32>
    %16 = math.exp %15 : vector<16x128xf32>
    %cst_7 = arith.constant 1.000000e+00 : f32
    %17 = vector.broadcast %cst_7 : f32 to vector<16x128xf32>
    %18 = arith.addf %17, %16 : vector<16x128xf32>
    %19 = math.log %18 : vector<16x128xf32>
    %20 = arith.addf %12, %19 : vector<16x128xf32>
    %c1_i32 = arith.constant 1 : i32
    %21 = arith.muli %arg0, %c1_i32 : i32
    %22 = arith.addi %21, %arg1 : i32
    %c2048_i32 = arith.constant 2048 : i32
    %23 = arith.muli %22, %c2048_i32 : i32
    %c2048_i32_8 = arith.constant 2048 : i32
    %24 = arith.addi %23, %c2048_i32_8 : i32
    %c8_i32 = arith.constant 8 : i32
    %25 = arith.cmpi sle, %24, %c8_i32 : i32
    %26 = arith.extui %25 : i1 to i32
    %c0_i32_9 = arith.constant 0 : i32
    %27 = arith.cmpi ne, %26, %c0_i32_9 : i32
    scf.if %27 {
      %c0_13 = arith.constant 0 : index
      %c0_14 = arith.constant 0 : index
      %c0_15 = arith.constant 0 : index
      %32 = vector.load %arg4[%c0_13, %c0_14, %c0_15] : memref<1x8x128xf32, #tpu.memory_space<vmem>>, vector<1x8x128xf32>
      %33 = vector.shape_cast %32 : vector<1x8x128xf32> to vector<8x128xf32>
      %34 = vector.shape_cast %20 : vector<16x128xf32> to vector<2x8x128xf32>
      %cst_16 = arith.constant dense<0.000000e+00> : vector<8x128xf32>
      %35 = vector.multi_reduction <add>, %34, %cst_16 [0] : vector<2x8x128xf32> to vector<8x128xf32>
      %36 = arith.addf %33, %35 : vector<8x128xf32>
      %c0_17 = arith.constant 0 : index
      %c0_18 = arith.constant 0 : index
      %c0_19 = arith.constant 0 : index
      %37 = vector.load %arg4[%c0_17, %c0_18, %c0_19] : memref<1x8x128xf32, #tpu.memory_space<vmem>>, vector<1x8x128xf32>
      %38 = vector.shape_cast %37 : vector<1x8x128xf32> to vector<8x128xf32>
      %39 = vector.shape_cast %36 : vector<8x128xf32> to vector<1x8x128xf32>
      tpu.vector_store %arg4[%c0_17, %c0_18, %c0_19], %39 {strides = array<i32>} : memref<1x8x128xf32, #tpu.memory_space<vmem>>, vector<1x8x128xf32>,
      %c0_20 = arith.constant 0 : index
      %c0_21 = arith.constant 0 : index
      %c0_22 = arith.constant 0 : index
      %40 = vector.load %arg5[%c0_20, %c0_21, %c0_22] : memref<1x8x128xf32, #tpu.memory_space<vmem>>, vector<1x8x128xf32>
      %41 = vector.shape_cast %40 : vector<1x8x128xf32> to vector<8x128xf32>
      %42 = vector.shape_cast %5 : vector<16x128xf32> to vector<2x8x128xf32>
      %cst_23 = arith.constant dense<0.000000e+00> : vector<8x128xf32>
      %43 = vector.multi_reduction <add>, %42, %cst_23 [0] : vector<2x8x128xf32> to vector<8x128xf32>
      %44 = arith.addf %41, %43 : vector<8x128xf32>
      %c0_24 = arith.constant 0 : index
      %c0_25 = arith.constant 0 : index
      %c0_26 = arith.constant 0 : index
      %45 = vector.load %arg5[%c0_24, %c0_25, %c0_26] : memref<1x8x128xf32, #tpu.memory_space<vmem>>, vector<1x8x128xf32>
      %46 = vector.shape_cast %45 : vector<1x8x128xf32> to vector<8x128xf32>
      %47 = vector.shape_cast %44 : vector<8x128xf32> to vector<1x8x128xf32>
      tpu.vector_store %arg5[%c0_24, %c0_25, %c0_26], %47 {strides = array<i32>} : memref<1x8x128xf32, #tpu.memory_space<vmem>>, vector<1x8x128xf32>,
    } else {
    }
    %c2048_i32_10 = arith.constant 2048 : i32
    %28 = arith.addi %23, %c2048_i32_10 : i32
    %c8_i32_11 = arith.constant 8 : i32
    %29 = arith.cmpi sgt, %28, %c8_i32_11 : i32
    %30 = arith.extui %29 : i1 to i32
    %c0_i32_12 = arith.constant 0 : i32
    %31 = arith.cmpi ne, %30, %c0_i32_12 : i32
    scf.if %31 {
      %32 = tpu.iota {dimensions = array<i32: 0>} : vector<16x128xi32>
      %33 = tpu.iota {dimensions = array<i32: 1>} : vector<16x128xi32>
      %c128_i32 = arith.constant 128 : i32
      %34 = vector.broadcast %c128_i32 : i32 to vector<16x128xi32>
      %35 = arith.muli %32, %34 : vector<16x128xi32>
      %36 = vector.broadcast %23 : i32 to vector<16x128xi32>
      %37 = arith.addi %36, %35 : vector<16x128xi32>
      %38 = arith.addi %37, %33 : vector<16x128xi32>
      %c8_i32_13 = arith.constant 8 : i32
      %39 = vector.broadcast %c8_i32_13 : i32 to vector<16x128xi32>
      %40 = arith.cmpi slt, %38, %39 : vector<16x128xi32>
      %41 = arith.extui %40 : vector<16x128xi1> to vector<16x128xi32>
      %42 = arith.sitofp %41 : vector<16x128xi32> to vector<16x128xf32>
      %c0_14 = arith.constant 0 : index
      %c0_15 = arith.constant 0 : index
      %c0_16 = arith.constant 0 : index
      %43 = vector.load %arg4[%c0_14, %c0_15, %c0_16] : memref<1x8x128xf32, #tpu.memory_space<vmem>>, vector<1x8x128xf32>
      %44 = vector.shape_cast %43 : vector<1x8x128xf32> to vector<8x128xf32>
      %45 = arith.mulf %20, %42 : vector<16x128xf32>
      %46 = vector.shape_cast %45 : vector<16x128xf32> to vector<2x8x128xf32>
      %cst_17 = arith.constant dense<0.000000e+00> : vector<8x128xf32>
      %47 = vector.multi_reduction <add>, %46, %cst_17 [0] : vector<2x8x128xf32> to vector<8x128xf32>
      %48 = arith.addf %44, %47 : vector<8x128xf32>
      %c0_18 = arith.constant 0 : index
      %c0_19 = arith.constant 0 : index
      %c0_20 = arith.constant 0 : index
      %49 = vector.load %arg4[%c0_18, %c0_19, %c0_20] : memref<1x8x128xf32, #tpu.memory_space<vmem>>, vector<1x8x128xf32>
      %50 = vector.shape_cast %49 : vector<1x8x128xf32> to vector<8x128xf32>
      %51 = vector.shape_cast %48 : vector<8x128xf32> to vector<1x8x128xf32>
      tpu.vector_store %arg4[%c0_18, %c0_19, %c0_20], %51 {strides = array<i32>} : memref<1x8x128xf32, #tpu.memory_space<vmem>>, vector<1x8x128xf32>,
      %c0_21 = arith.constant 0 : index
      %c0_22 = arith.constant 0 : index
      %c0_23 = arith.constant 0 : index
      %52 = vector.load %arg5[%c0_21, %c0_22, %c0_23] : memref<1x8x128xf32, #tpu.memory_space<vmem>>, vector<1x8x128xf32>
      %53 = vector.shape_cast %52 : vector<1x8x128xf32> to vector<8x128xf32>
      %54 = arith.mulf %5, %42 : vector<16x128xf32>
      %55 = vector.shape_cast %54 : vector<16x128xf32> to vector<2x8x128xf32>
      %cst_24 = arith.constant dense<0.000000e+00> : vector<8x128xf32>
      %56 = vector.multi_reduction <add>, %55, %cst_24 [0] : vector<2x8x128xf32> to vector<8x128xf32>
      %57 = arith.addf %53, %56 : vector<8x128xf32>
      %c0_25 = arith.constant 0 : index
      %c0_26 = arith.constant 0 : index
      %c0_27 = arith.constant 0 : index
      %58 = vector.load %arg5[%c0_25, %c0_26, %c0_27] : memref<1x8x128xf32, #tpu.memory_space<vmem>>, vector<1x8x128xf32>
      %59 = vector.shape_cast %58 : vector<1x8x128xf32> to vector<8x128xf32>
      %60 = vector.shape_cast %57 : vector<8x128xf32> to vector<1x8x128xf32>
      tpu.vector_store %arg5[%c0_25, %c0_26, %c0_27], %60 {strides = array<i32>} : memref<1x8x128xf32, #tpu.memory_space<vmem>>, vector<1x8x128xf32>,
    } else {
    }
    return
  }
  func.func @transform_0(%arg0: i32, %arg1: i32) -> (i32, i32) {
    %c1_i32 = arith.constant 1 : i32
    %0 = arith.muli %arg0, %c1_i32 : i32
    %1 = arith.addi %0, %arg1 : i32
    %c0_i32 = arith.constant 0 : i32
    %c0_i32_0 = arith.constant 0 : i32
    return %1, %c0_i32 : i32, i32
  }
  func.func @transform_1(%arg0: i32, %arg1: i32) -> (i32, i32) {
    %c1_i32 = arith.constant 1 : i32
    %0 = arith.muli %arg0, %c1_i32 : i32
    %1 = arith.addi %0, %arg1 : i32
    %c0_i32 = arith.constant 0 : i32
    %c0_i32_0 = arith.constant 0 : i32
    return %1, %c0_i32 : i32, i32
  }
  func.func @transform_2(%arg0: i32, %arg1: i32) -> (i32, i32, i32) {
    %c0_i32 = arith.constant 0 : i32
    %c0_i32_0 = arith.constant 0 : i32
    %c0_i32_1 = arith.constant 0 : i32
    return %arg0, %c0_i32, %c0_i32_0 : i32, i32, i32
  }
  func.func @transform_3(%arg0: i32, %arg1: i32) -> (i32, i32, i32) {
    %c0_i32 = arith.constant 0 : i32
    %c0_i32_0 = arith.constant 0 : i32
    %c0_i32_1 = arith.constant 0 : i32
    return %arg0, %c0_i32, %c0_i32_0 : i32, i32, i32
  }
}

</mosaic_0001>

<llo_original>
// kernel: focal_loss.1
$region0: #{focal_loss.1}
  #allocation0 [shape = 'u32[]', space=smem, size = 0x4, offset = 0x4, fixed_abs, tag = 'smem constant byte address 0x4 - core index']
  #allocation1 [shape = 'u32[144,128]{1,0:T(1,128)}', space=vmem, size = 0x12000, scoped, tag = 'internal scratch']
  %s0 = inlined_call_operand.vmem [shape: f32[32,128], index: 0, kind: input, shape index: {}]
  %s1 = inlined_call_operand.vmem [shape: bf16[32,128], index: 1, kind: input, shape index: {}]
  %s2 = inlined_call_operand.vmem [shape: f32[2,8,128], index: 2, kind: output, shape index: {0}]
  %s3 = inlined_call_operand.vmem [shape: f32[2,8,128], index: 3, kind: output, shape index: {1}]
  %4 = xla_tuple %s2, %s3
  %s5 = sld [smem:[#allocation0]]
  $region61: #{focal_loss.1} parent=0
    _
  %s7 = ssub.s32 1, %s5
  %s8 = scalar_select 0, %s7, %s5
  loop: start=0, step=1, limit=4
  $region2: #{focal_loss.1} parent=0 // loop_pre_header
    _
  $region3: #{focal_loss.1} parent=0 // loop_header
    %s10 = sphi 0, %s14
    %p11 = scmp.ge.s32.totalorder %s10, 4
    %s17 = sphi 0, %s29
    %s18 = sphi 0, %s25
    %s19 = sphi 0, %s17
    %s20 = sphi 0, %s18
    %s21 = sphi 0, %s19
    %s22 = sphi 0, %s20
    %s34 = sphi 0, %s36
    %s37 = sphi 0, %s34
    %s38 = sphi 0, %s37
    %s54 = sphi 0, %s38
    %s62 = sphi 0, %s64
    %s65 = sphi 0, %s62
    %s66 = sphi 0, %s65
    %s82 = sphi 0, %s66
    %s88 = sphi 0, %s90
    %s91 = sphi 0, %s88
    %s92 = sphi 0, %s91
    %s108 = sphi 0, %s92
    %s114 = sphi 0, %s116
    %s117 = sphi 0, %s114
    %s118 = sphi 0, %s117
    %s134 = sphi 0, %s118
  $region4: #{focal_loss.1} parent=0 // loop_header_branch
    %13 = sbr.rel (%p11) target = $region8
  $region5: #{focal_loss.1} parent=0 // loop_body
    %s15 = ssub.s32 %s10, 1
    %s16 = ssub.s32 %s10, 2
    %s23 = sadd.s32 1, %s18
    %p24 = scmp.ge.s32.totalorder %s23, 1
    %s25 = scalar_select %p24, 0, %s23
    %s26 = sadd.s32 1, %s17
    %s27 = scalar_select %p24, %s26, %s17
    %p28 = scmp.ge.s32.totalorder %s27, 2
    %s29 = scalar_select %p28, 0, %s27
    %s30 = sadd.s32 %s17, %s18
    %s31 = sadd.s32 %s29, %s25
    %s32 = ssub.s32 %s30, %s31
    %p33 = scmp.eq.s32.totalorder %s32, 0
    %s35 = sadd.s32 %s34, 1
    %s36 = scalar_select %p33, %s34, %s35
    %p39 = pneg %p33
    %p40 = scmp.eq.s32.totalorder %s10, 1
    %p41 = por %p39, %p40
    %p42 = scmp.ne.s32.totalorder %s34, %s37
    %p43 = scmp.eq.s32.totalorder %s10, 0
    %p44 = por %p42, %p43
    %p45 = scmp.ne.s32.totalorder %s34, %s37
    %p46 = scmp.eq.s32.totalorder %s15, 1
    %p47 = por %p45, %p46
    %p48 = scmp.ne.s32.totalorder %s37, %s38
    %p49 = scmp.eq.s32.totalorder %s15, 0
    %p50 = por %p48, %p49
    %p51 = scmp.ne.s32.totalorder %s37, %s38
    %p52 = scmp.eq.s32.totalorder %s16, 1
    %p53 = por %p51, %p52
    %p55 = scmp.ne.s32.totalorder %s38, %s54
    %p56 = scmp.eq.s32.totalorder %s16, 0
    %p57 = por %p55, %p56
    %s58 = sadd.s32 %s17, %s18
    %s59 = sadd.s32 %s29, %s25
    %s60 = ssub.s32 %s58, %s59
    %p61 = scmp.eq.s32.totalorder %s60, 0
    %s63 = sadd.s32 %s62, 1
    %s64 = scalar_select %p61, %s62, %s63
    %p67 = pneg %p61
    %p68 = scmp.eq.s32.totalorder %s10, 1
    %p69 = por %p67, %p68
    %p70 = scmp.ne.s32.totalorder %s62, %s65
    %p71 = scmp.eq.s32.totalorder %s10, 0
    %p72 = por %p70, %p71
    %p73 = scmp.ne.s32.totalorder %s62, %s65
    %p74 = scmp.eq.s32.totalorder %s15, 1
    %p75 = por %p73, %p74
    %p76 = scmp.ne.s32.totalorder %s65, %s66
    %p77 = scmp.eq.s32.totalorder %s15, 0
    %p78 = por %p76, %p77
    %p79 = scmp.ne.s32.totalorder %s65, %s66
    %p80 = scmp.eq.s32.totalorder %s16, 1
    %p81 = por %p79, %p80
    %p83 = scmp.ne.s32.totalorder %s66, %s82
    %p84 = scmp.eq.s32.totalorder %s16, 0
    %p85 = por %p83, %p84
    %s86 = ssub.s32 %s17, %s29
    %p87 = scmp.eq.s32.totalorder %s86, 0
    %s89 = sadd.s32 %s88, 1
    %s90 = scalar_select %p87, %s88, %s89
    %p93 = pneg %p87
    %p94 = scmp.eq.s32.totalorder %s10, 1
    %p95 = por %p93, %p94
    %p96 = scmp.ne.s32.totalorder %s88, %s91
    %p97 = scmp.eq.s32.totalorder %s10, 0
    %p98 = por %p96, %p97
    %p99 = scmp.ne.s32.totalorder %s88, %s91
    %p100 = scmp.eq.s32.totalorder %s15, 1
    %p101 = por %p99, %p100
    %p102 = scmp.ne.s32.totalorder %s91, %s92
    %p103 = scmp.eq.s32.totalorder %s15, 0
    %p104 = por %p102, %p103
    %p105 = scmp.ne.s32.totalorder %s91, %s92
    %p106 = scmp.eq.s32.totalorder %s16, 1
    %p107 = por %p105, %p106
    %p109 = scmp.ne.s32.totalorder %s92, %s108
    %p110 = scmp.eq.s32.totalorder %s16, 0
    %p111 = por %p109, %p110
    %s112 = ssub.s32 %s17, %s29
    %p113 = scmp.eq.s32.totalorder %s112, 0
    %s115 = sadd.s32 %s114, 1
    %s116 = scalar_select %p113, %s114, %s115
    %p119 = pneg %p113
    %p120 = scmp.eq.s32.totalorder %s10, 1
    %p121 = por %p119, %p120
    %p122 = scmp.ne.s32.totalorder %s114, %s117
    %p123 = scmp.eq.s32.totalorder %s10, 0
    %p124 = por %p122, %p123
    %p125 = scmp.ne.s32.totalorder %s114, %s117
    %p126 = scmp.eq.s32.totalorder %s15, 1
    %p127 = por %p125, %p126
    %p128 = scmp.ne.s32.totalorder %s117, %s118
    %p129 = scmp.eq.s32.totalorder %s15, 0
    %p130 = por %p128, %p129
    %p131 = scmp.ne.s32.totalorder %s117, %s118
    %p132 = scmp.eq.s32.totalorder %s16, 1
    %p133 = por %p131, %p132
    %p135 = scmp.ne.s32.totalorder %s118, %s134
    %p136 = scmp.eq.s32.totalorder %s16, 0
    %p137 = por %p135, %p136
    %p138 = scmp.le.s32.totalorder 1, %s10
    %p139 = scmp.lt.s32.totalorder %s10, 3
    %p140 = pnand %p138, %p139
    %p141 = pneg %p140
    // Predicated region
    $region9: #{focal_loss.1} parent=5 // pred_check
      _
    $region10: #{focal_loss.1} parent=5 // pred_check_branch
      %143 = sbr.rel (%p140) target = $region12
    $region11: #{focal_loss.1} parent=5 // pred_region
      %s144 = ssub.s32 %s10, 1
    $region12: #{focal_loss.1} parent=5 // pred_fallthru
      _
    %p145 = scmp.lt.s32.totalorder %s10, 2
    // Predicated region
    $region13: #{focal_loss.1} parent=5 // pred_check
      %p146 = pneg %p145
    $region14: #{focal_loss.1} parent=5 // pred_check_branch
      %148 = sbr.rel (%p146) target = $region16
    $region15: #{focal_loss.1} parent=5 // pred_region
      // Predicated region
      $region17: #{focal_loss.1} parent=15 // pred_check
        %p149 = pneg %p44
      $region18: #{focal_loss.1} parent=15 // pred_check_branch
        %151 = sbr.rel (%p149) target = $region20
      $region19: #{focal_loss.1} parent=15 // pred_region
        %s152 = sadd.s32 %s17, %s18
        %s153 = smul.u32 2, %s152
        %p154 = scmp.lt.s32.totalorder %s153, 3
        %s155 = scalar_select %p154, %s153, 3
        %s156 = smul.addr %s155, 8
        %s157 = scalar_lea.vmem %s0, %s156
        %s158 = sadd.s32 %s17, %s18
        %s159 = smul.u32 2, %s158
      $region20: #{focal_loss.1} parent=15 // pred_fallthru
        _
      // Predicated region
      $region21: #{focal_loss.1} parent=15 // pred_check
        %p160 = pneg %p72
      $region22: #{focal_loss.1} parent=15 // pred_check_branch
        %162 = sbr.rel (%p160) target = $region24
      $region23: #{focal_loss.1} parent=15 // pred_region
        %s163 = sadd.s32 %s17, %s18
        %s164 = smul.u32 2, %s163
        %p165 = scmp.lt.s32.totalorder %s164, 3
        %s166 = scalar_select %p165, %s164, 3
        %s167 = smul.addr %s166, 4
        %s168 = scalar_lea.vmem %s1, %s167
        %s169 = sadd.s32 %s17, %s18
        %s170 = smul.u32 2, %s169
      $region24: #{focal_loss.1} parent=15 // pred_fallthru
        _
    $region16: #{focal_loss.1} parent=5 // pred_fallthru
      _
    %p171 = scmp.le.s32.totalorder 1, %s10
    %p172 = scmp.lt.s32.totalorder %s10, 3
    %p173 = pnand %p171, %p172
    %p174 = pneg %p173
    // Predicated region
    $region25: #{focal_loss.1} parent=5 // pred_check
      _
    $region26: #{focal_loss.1} parent=5 // pred_check_branch
      %176 = sbr.rel (%p173) target = $region28
    $region27: #{focal_loss.1} parent=5 // pred_region
      %s177 = ssub.s32 %s10, 1
      %s178 = sadd.s32 %s19, %s20
      %s179 = smul.u32 2, %s178
      %p180 = scmp.lt.s32.totalorder %s179, 3
      %s181 = scalar_select %p180, %s179, 3
      %s182 = smul.addr %s181, 8
      %s183 = scalar_lea.vmem %s0, %s182
      %p184 = pneg %p50
      %p185 = pneg %p47
      %s186 = sadd.s32 %s19, %s20
      %s187 = smul.u32 2, %s186
      %p188 = scmp.lt.s32.totalorder %s187, 3
      %s189 = scalar_select %p188, %s187, 3
      %s190 = smul.addr %s189, 4
      %s191 = scalar_lea.vmem %s1, %s190
      %p192 = pneg %p78
      %p193 = pneg %p75
      %p194 = pneg %p104
      %p195 = pneg %p101
      %p196 = scmp.lt.s32.totalorder %s19, 1
      %s197 = scalar_select %p196, %s19, 1
      %s198 = smul.addr %s197, 8
      %s199 = scalar_lea.vmem %s2, %s198
      %p200 = pneg %p130
      %p201 = pneg %p127
      %p202 = scmp.lt.s32.totalorder %s19, 1
      %s203 = scalar_select %p202, %s19, 1
      %s204 = smul.addr %s203, 8
      %s205 = scalar_lea.vmem %s3, %s204
      %s206 = sadd.s32 %s19, %s20
      %s207 = smul.u32 2, %s206
      %p208 = scmp.lt.s32.totalorder %s207, 3
      %s209 = scalar_select %p208, %s207, 3
      %s210 = smul.addr %s209, 8
      %s211 = scalar_lea.vmem %s0, %s210
      %s212 = sadd.s32 %s19, %s20
      %s213 = smul.u32 2, %s212
      %s214 = sadd.s32 %s19, %s20
      %s215 = smul.u32 2, %s214
      %p216 = scmp.lt.s32.totalorder %s215, 3
      %s217 = scalar_select %p216, %s215, 3
      %s218 = smul.addr %s217, 4
      %s219 = scalar_lea.vmem %s1, %s218
      %s220 = sadd.s32 %s19, %s20
      %s221 = smul.u32 2, %s220
      %p222 = scmp.lt.s32.totalorder %s19, 1
      %s223 = scalar_select %p222, %s19, 1
      %s224 = smul.addr %s223, 8
      %s225 = scalar_lea.vmem %s2, %s224
      %p226 = scmp.lt.s32.totalorder %s19, 1
      %s227 = scalar_select %p226, %s19, 1
      %s228 = smul.addr %s227, 8
      %s229 = scalar_lea.vmem %s3, %s228
      %p230 = scmp.eq.s32.totalorder %s20, 0
      // Predicated region
      $region29: #{focal_loss.1} parent=27 // pred_check
        %p231 = pneg %p230
      $region30: #{focal_loss.1} parent=27 // pred_check_branch
        %233 = sbr.rel (%p231) target = $region32
      $region31: #{focal_loss.1} parent=27 // pred_region
        %234 = vst [vmem:[%s225] sm:$0xff] 0.0
        %235 = vst [vmem:[%s229] sm:$0xff] 0.0
      $region32: #{focal_loss.1} parent=27 // pred_fallthru
        _
      %v236 = vld [vmem:[%s211] sm:$0xff]
      %v237 = vld [vmem:[%s211 + $0x8] sm:$0xff]
      %v238 = vld [vmem:[%s219] sm:$0xf]
      %v239 = vld [vmem:[%s219 + $0x4] sm:$0xf]
      %v240 = vunpack.c.l.bf16 %v238
      %v241 = vunpack.c.l.bf16 %v239
      %v242 = vmul.f32 %v240, 2.0
      %v243 = vmul.f32 %v241, 2.0
      %v244 = vsub.f32 1.0, %v242
      %v245 = vsub.f32 1.0, %v243
      %v246 = vmul.f32 %v244, %v236
      %v247 = vmul.f32 %v245, %v237
      %v248 = vmax.f32 %v246, 0.0
      %v249 = vmax.f32 %v247, 0.0
      %v250 = vand.u32 2147483647, %v246
      %v251 = vand.u32 2147483647, %v247
      %v252 = vsub.f32 0.0, %v250
      %v253 = vsub.f32 0.0, %v251
      %v254 = vmul.f32 %v252, 1.442695
      %v255 = vpow.pop %v254
      %v256 = vmul.f32 %v253, 1.442695
      %v257 = vpow.pop %v256
      %v258 = vadd.f32 %v255, 1.0
      %v259 = vadd.f32 %v257, 1.0
      %v260 = vlog2.pop %v258
      %v261 = vmul.f32 %v260, 0.6931472
      %v262 = vlog2.pop %v259
      %v263 = vmul.f32 %v262, 0.6931472
      %v264 = vadd.f32 %v248, %v261
      %v265 = vadd.f32 %v249, %v263
      %s266 = sadd.s32 %s19, %s20
      %s267 = smul.u32 %s266, 2048
      %s268 = sadd.s32 %s267, 2048
      %p269 = scmp.le.s32.totalorder %s268, 8
      // Predicated region
      $region33: #{focal_loss.1} parent=27 // pred_check
        %p270 = pneg %p269
      $region34: #{focal_loss.1} parent=27 // pred_check_branch
        %272 = sbr.rel (%p270) target = $region36
      $region35: #{focal_loss.1} parent=27 // pred_region
        %v273 = vld [vmem:[%s225] sm:$0xff]
        %v274 = vadd.f32 %v264, %v265
        %v275 = vadd.f32 %v273, %v274
        %276 = vst [vmem:[%s225] sm:$0xff] %v275
        %v277 = vld [vmem:[%s229] sm:$0xff]
        %v278 = vadd.f32 %v240, %v241
        %v279 = vadd.f32 %v277, %v278
        %280 = vst [vmem:[%s229] sm:$0xff] %v279
      $region36: #{focal_loss.1} parent=27 // pred_fallthru
        _
      %p281 = scmp.gt.s32.totalorder %s268, 8
      // Predicated region
      $region37: #{focal_loss.1} parent=27 // pred_check
        %p282 = pneg %p281
      $region38: #{focal_loss.1} parent=27 // pred_check_branch
        %284 = sbr.rel (%p282) target = $region40
      $region39: #{focal_loss.1} parent=27 // pred_region
        %v285 = vlaneseq
        %v286 = vshrl.u32 %v285, 7
        %v287 = vadd.s32 %v286, 8
        %v288 = vlaneseq
        %v289 = vand.u32 %v288, 127
        %v290 = vmul.u32 %v286, 128
        %v291 = vmul.u32 %v287, 128
        %v292 = vstv %s267
        %v293 = vadd.s32 %v292, %v290
        %v294 = vadd.s32 %v292, %v291
        %v295 = vadd.s32 %v293, %v289
        %v296 = vadd.s32 %v294, %v289
        %vm297 = vcmp.lt.s32.totalorder %v295, 8
        %vm298 = vcmp.lt.s32.totalorder %v296, 8
        %v299 = vsel %vm297, 1, 0
        %v300 = vsel %vm298, 1, 0
        %v301 = vcvt.s32.f32 %v299
        %v302 = vcvt.s32.f32 %v300
        %v303 = vld [vmem:[%s225] sm:$0xff]
        %v304 = vmul.f32 %v264, %v301
        %v305 = vmul.f32 %v265, %v302
        %v306 = vadd.f32 %v304, %v305
        %v307 = vadd.f32 %v303, %v306
        %308 = vst [vmem:[%s225] sm:$0xff] %v307
        %v309 = vld [vmem:[%s229] sm:$0xff]
        %v310 = vmul.f32 %v240, %v301
        %v311 = vmul.f32 %v241, %v302
        %v312 = vadd.f32 %v310, %v311
        %v313 = vadd.f32 %v309, %v312
        %314 = vst [vmem:[%s229] sm:$0xff] %v313
      $region40: #{focal_loss.1} parent=27 // pred_fallthru
        _
      %p315 = scmp.lt.s32.totalorder %s19, 1
      %s316 = scalar_select %p315, %s19, 1
      %s317 = smul.addr %s316, 8
      %s318 = scalar_lea.vmem %s2, %s317
      %p319 = scmp.lt.s32.totalorder %s19, 1
      %s320 = scalar_select %p319, %s19, 1
      %s321 = smul.addr %s320, 8
      %s322 = scalar_lea.vmem %s3, %s321
      // Predicated region
      $region41: #{focal_loss.1} parent=27 // pred_check
        %p323 = pneg %p101
      $region42: #{focal_loss.1} parent=27 // pred_check_branch
        %325 = sbr.rel (%p323) target = $region44
      $region43: #{focal_loss.1} parent=27 // pred_region
        _
      $region44: #{focal_loss.1} parent=27 // pred_fallthru
        _
      // Predicated region
      $region45: #{focal_loss.1} parent=27 // pred_check
        %p326 = pneg %p127
      $region46: #{focal_loss.1} parent=27 // pred_check_branch
        %328 = sbr.rel (%p326) target = $region48
      $region47: #{focal_loss.1} parent=27 // pred_region
        _
      $region48: #{focal_loss.1} parent=27 // pred_fallthru
        _
    $region28: #{focal_loss.1} parent=5 // pred_fallthru
      _
    %p329 = scmp.le.s32.totalorder 2, %s10
    // Predicated region
    $region49: #{focal_loss.1} parent=5 // pred_check
      %p330 = pneg %p329
    $region50: #{focal_loss.1} parent=5 // pred_check_branch
      %332 = sbr.rel (%p330) target = $region52
    $region51: #{focal_loss.1} parent=5 // pred_region
      %s333 = ssub.s32 %s10, 2
      // Predicated region
      $region53: #{focal_loss.1} parent=51 // pred_check
        %p334 = pneg %p107
      $region54: #{focal_loss.1} parent=51 // pred_check_branch
        %336 = sbr.rel (%p334) target = $region56
      $region55: #{focal_loss.1} parent=51 // pred_region
        %p337 = scmp.lt.s32.totalorder %s21, 1
        %s338 = scalar_select %p337, %s21, 1
        %s339 = smul.addr %s338, 8
        %s340 = scalar_lea.vmem %s2, %s339
      $region56: #{focal_loss.1} parent=51 // pred_fallthru
        _
      // Predicated region
      $region57: #{focal_loss.1} parent=51 // pred_check
        %p341 = pneg %p133
      $region58: #{focal_loss.1} parent=51 // pred_check_branch
        %343 = sbr.rel (%p341) target = $region60
      $region59: #{focal_loss.1} parent=51 // pred_region
        %p344 = scmp.lt.s32.totalorder %s21, 1
        %s345 = scalar_select %p344, %s21, 1
        %s346 = smul.addr %s345, 8
        %s347 = scalar_lea.vmem %s3, %s346
      $region60: #{focal_loss.1} parent=51 // pred_fallthru
        _
    $region52: #{focal_loss.1} parent=5 // pred_fallthru
      _
  $region6: #{focal_loss.1} parent=0 // loop_footer
    %s14 = sadd.s32 1, %s10
  $region7: #{focal_loss.1} parent=0 // loop_footer_branch
    %9 = sbr.rel target = $region3
  $region8: #{focal_loss.1} parent=0 // loop_exit
    _

</llo_original>
